<compile_context>
chip_gen: v5e
topology: v5e:2x2
jax: 0.10.0
libtpu: 0.0.40
codegen_flags: <defaults>
</compile_context>

<pallas_src>
import jax
import jax.numpy as jnp
from jax.experimental import pallas as pl
from jax.experimental.pallas import tpu as pltpu

LANE = 128  # pad the filter-bank / feature width to one full vreg lane width


# --------------------------- fused Pallas kernel -----------------------------

def _discriminator_kernel(tok_ref, embt_ref, wc_ref, bc_ref, mask_ref,
                          wh_ref, bh_ref, wl_ref, bl_ref, out_ref):
    bt = tok_ref.shape[0]               # B*T
    vocab = embt_ref.shape[0]
    f_max, e, npad = wc_ref.shape
    b = out_ref.shape[0]
    t = bt // b

    # ---- embedding as a one-hot matmul on the MXU ---------------------------
    tok = tok_ref[...]                                               # (B*T, 1) int32
    vocab_ids = jax.lax.broadcasted_iota(jnp.int32, (bt, vocab), 1)  # (B*T, V)
    one_hot = jnp.where(tok == vocab_ids, 1.0, 0.0).astype(jnp.bfloat16)
    emb = jnp.dot(one_hot, embt_ref[...],
                  preferred_element_type=jnp.float32)                # (B*T, E) f32
    emb_bf = emb.astype(jnp.bfloat16)

    # ---- fused conv bank: f_max shifted matmuls against (E, 128) slabs ------
    # scores[b*T+t, c] = sum_tau emb[b, t+tau] @ wc[tau][:, c]
    scores = jnp.dot(emb_bf, wc_ref[0], preferred_element_type=jnp.float32)
    for tau in range(1, f_max):
        shifted = jnp.concatenate(
            [emb_bf[tau:, :], jnp.zeros((tau, e), jnp.bfloat16)], axis=0)
        scores = scores + jnp.dot(shifted, wc_ref[tau],
                                  preferred_element_type=jnp.float32)

    act = jnp.maximum(scores + bc_ref[...], 0.0)     # ReLU, (B*T, 128) f32
    # mask kills (a) out-of-range window positions per filter size and
    # (b) lane-padding columns; exact because ReLU output >= 0.
    act = act.reshape(b, t, npad) * mask_ref[...]    # (B, T, 128)
    pooled = jnp.max(act, axis=1)                    # max-pool over time, (B, 128)

    # ---- highway -------------------------------------------------------------
    h = jnp.dot(pooled.astype(jnp.bfloat16), wh_ref[...],
                preferred_element_type=jnp.float32) + bh_ref[...]
    sig = pl.reciprocal(1.0 + jnp.exp(-h), approx=True)   # sigmoid via EUP
    hw = sig * jnp.maximum(h, 0.0) + (1.0 - sig) * pooled

    # TODO(synk): dropout is identity here (eval-mode semantics; no RNG mask).
    logits = jnp.dot(hw.astype(jnp.bfloat16), wl_ref[...],
                     preferred_element_type=jnp.float32) + bl_ref[...]

    # stable LogSoftmax(dim=1)
    m = jnp.max(logits, axis=1, keepdims=True)
    z = logits - m
    lse = jnp.log(jnp.sum(jnp.exp(z), axis=1, keepdims=True))
    out_ref[...] = z - lse


# --------------------------- parameters --------------------------------------

def init_params(key, num_classes, vocab_size, emb_dim, filter_sizes,
                num_filters, seq_len, n_pad=LANE):
    """Uniform(-0.05, 0.05) init (matching Discriminator.init_parameters),
    packed into lane-dense, MXU-friendly operands for the fused kernel."""
    f_total = sum(num_filters)
    assert f_total <= n_pad
    f_max = max(filter_sizes)
    keys = iter(jax.random.split(key, 1 + 2 * len(filter_sizes) + 4))
    u = lambda shape: jax.random.uniform(next(keys), shape, jnp.float32,
                                         -0.05, 0.05)

    emb = u((vocab_size, emb_dim))

    # Fused conv bank: wc[tau] is the (E, n_pad) weight slab for window offset tau.
    wc = jnp.zeros((f_max, emb_dim, n_pad), jnp.float32)
    bc = jnp.zeros((1, n_pad), jnp.float32)
    col_len = jnp.zeros((n_pad,), jnp.int32)   # valid window count per column
    off = 0
    for n, f in zip(num_filters, filter_sizes):
        w = u((n, f, emb_dim))                 # Conv2d(1, n, (f, E)) weight (in-ch squeezed)
        bias = u((n,))
        wc = wc.at[:f, :, off:off + n].set(jnp.transpose(w, (1, 2, 0)))
        bc = bc.at[0, off:off + n].set(bias)
        col_len = col_len.at[off:off + n].set(seq_len - f + 1)
        off += n

    # (T, n_pad) validity mask: 1 where the conv window is fully in-bounds.
    mask = (jnp.arange(seq_len)[:, None] < col_len[None, :]).astype(jnp.float32)

    wh = jnp.zeros((n_pad, n_pad), jnp.float32).at[:f_total, :f_total].set(
        u((f_total, f_total)))
    bh = jnp.zeros((1, n_pad), jnp.float32).at[0, :f_total].set(u((f_total,)))
    wl = jnp.zeros((n_pad, num_classes), jnp.float32).at[:f_total, :].set(
        u((f_total, num_classes)))
    bl = u((num_classes,)).reshape(1, num_classes)

    return {
        "emb": emb.astype(jnp.bfloat16),    # bf16 MXU operands, f32 accumulation
        "wc": wc.astype(jnp.bfloat16),
        "bc": bc,
        "mask": mask,
        "wh": wh.astype(jnp.bfloat16),
        "bh": bh,
        "wl": wl.astype(jnp.bfloat16),
        "bl": bl,
    }


# --------------------------- forward ------------------------------------------

def discriminator_forward(params, x):
    b, t = x.shape
    tok = x.reshape(b * t, 1).astype(jnp.int32)
    num_classes = params["wl"].shape[1]
    vmem = pl.BlockSpec(memory_space=pltpu.MemorySpace.VMEM)
    return pl.pallas_call(
        _discriminator_kernel,
        out_shape=jax.ShapeDtypeStruct((b, num_classes), jnp.float32),
        in_specs=[vmem] * 9,
        out_specs=vmem,
    )(tok, params["emb"], params["wc"], params["bc"], params["mask"],
      params["wh"], params["bh"], params["wl"], params["bl"])


# --------------------------- main ----------------------------------------------

if __name__ == "__main__":
    num_classes = 2
    vocab_size = 32
    emb_dim = 16
    filter_sizes = [2, 3]
    num_filters = [8, 16]
    dropout = 0.2          # identity at inference
    batch = 2
    seq_len = 8

    root = jax.random.PRNGKey(0)
    k_params, k_tokens = jax.random.split(root)

    params = init_params(k_params, num_classes, vocab_size, emb_dim,
                         filter_sizes, num_filters, seq_len)
    x = jax.random.randint(k_tokens, (batch, seq_len), 0, vocab_size,
                           dtype=jnp.int32)

    out = discriminator_forward(params, x)     # (batch, num_classes) log-probs
    jax.block_until_ready(out)

    assert out.shape == (batch, num_classes)
    assert bool(jnp.all(jnp.isfinite(out)))
    # log-probabilities should normalize per row
    assert bool(jnp.allclose(jnp.sum(jnp.exp(out), axis=1), 1.0, atol=1e-3))
    print("KERNEL_OK")
</pallas_src>

<mosaic_0001>
module attributes {stable_mosaic.version = 11 : i64} {
  func.func @_discriminator_kernel(%arg0: memref<16x1xi32, #tpu.memory_space<vmem>>, %arg1: memref<32x16xbf16, #tpu.memory_space<vmem>>, %arg2: memref<3x16x128xbf16, #tpu.memory_space<vmem>>, %arg3: memref<1x128xf32, #tpu.memory_space<vmem>>, %arg4: memref<8x128xf32, #tpu.memory_space<vmem>>, %arg5: memref<128x128xbf16, #tpu.memory_space<vmem>>, %arg6: memref<1x128xf32, #tpu.memory_space<vmem>>, %arg7: memref<128x2xbf16, #tpu.memory_space<vmem>>, %arg8: memref<1x2xf32, #tpu.memory_space<vmem>>, %arg9: memref<2x2xf32, #tpu.memory_space<vmem>>) attributes {dimension_semantics = [], scalar_prefetch = 0 : i64, scratch_operands = 0 : i64, tpu.core_type = #tpu.core_type<tc>} {
    %c0 = arith.constant 0 : index
    %c0_0 = arith.constant 0 : index
    %0 = vector.load %arg0[%c0, %c0_0] : memref<16x1xi32, #tpu.memory_space<vmem>>, vector<16x1xi32>
    %1 = tpu.iota {dimensions = array<i32: 1>} : vector<16x32xi32>
    %2 = vector.broadcast %0 : vector<16x1xi32> to vector<16x32xi32>
    %3 = arith.cmpi eq, %2, %1 : vector<16x32xi32>
    %cst = arith.constant 1.000000e+00 : f32
    %cst_1 = arith.constant 0.000000e+00 : f32
    %4 = vector.broadcast %cst : f32 to vector<16x32xf32>
    %5 = vector.broadcast %cst_1 : f32 to vector<16x32xf32>
    %6 = arith.select %3, %4, %5 : vector<16x32xi1>, vector<16x32xf32>
    %7 = arith.truncf %6 : vector<16x32xf32> to vector<16x32xbf16>
    %c0_2 = arith.constant 0 : index
    %c0_3 = arith.constant 0 : index
    %8 = vector.load %arg1[%c0_2, %c0_3] : memref<32x16xbf16, #tpu.memory_space<vmem>>, vector<32x16xbf16>
    %cst_4 = arith.constant dense<0.000000e+00> : vector<16x16xf32>
    %9 = tpu.matmul %7, %8, %cst_4 {dimension_numbers = #tpu.dot_dimension_numbers<[1], [0], [0], [1], [0, 0, 1, 1], [], []>} : vector<16x32xbf16>, vector<32x16xbf16>, vector<16x16xf32> -> vector<16x16xf32>
    %10 = arith.truncf %9 : vector<16x16xf32> to vector<16x16xbf16>
    %c0_5 = arith.constant 0 : index
    %c0_6 = arith.constant 0 : index
    %c0_7 = arith.constant 0 : index
    %11 = vector.load %arg2[%c0_5, %c0_6, %c0_7] : memref<3x16x128xbf16, #tpu.memory_space<vmem>>, vector<1x16x128xbf16>
    %12 = vector.shape_cast %11 : vector<1x16x128xbf16> to vector<16x128xbf16>
    %cst_8 = arith.constant dense<0.000000e+00> : vector<16x128xf32>
    %13 = tpu.matmul %10, %12, %cst_8 {dimension_numbers = #tpu.dot_dimension_numbers<[1], [0], [0], [1], [0, 0, 1, 1], [], []>} : vector<16x16xbf16>, vector<16x128xbf16>, vector<16x128xf32> -> vector<16x128xf32>
    %14 = vector.extract_strided_slice %10 {offsets = [1, 0], sizes = [15, 16], strides = [1, 1]} : vector<16x16xbf16> to vector<15x16xbf16>
    %cst_9 = arith.constant 0.000000e+00 : bf16
    %15 = vector.broadcast %cst_9 : bf16 to vector<1x16xbf16>
    %16 = tpu.concatenate %14, %15 in 0 : vector<15x16xbf16>, vector<1x16xbf16> -> vector<16x16xbf16>
    %c1 = arith.constant 1 : index
    %c0_10 = arith.constant 0 : index
    %c0_11 = arith.constant 0 : index
    %17 = vector.load %arg2[%c1, %c0_10, %c0_11] : memref<3x16x128xbf16, #tpu.memory_space<vmem>>, vector<1x16x128xbf16>
    %18 = vector.shape_cast %17 : vector<1x16x128xbf16> to vector<16x128xbf16>
    %cst_12 = arith.constant dense<0.000000e+00> : vector<16x128xf32>
    %19 = tpu.matmul %16, %18, %cst_12 {dimension_numbers = #tpu.dot_dimension_numbers<[1], [0], [0], [1], [0, 0, 1, 1], [], []>} : vector<16x16xbf16>, vector<16x128xbf16>, vector<16x128xf32> -> vector<16x128xf32>
    %20 = arith.addf %13, %19 : vector<16x128xf32>
    %21 = vector.extract_strided_slice %10 {offsets = [2, 0], sizes = [14, 16], strides = [1, 1]} : vector<16x16xbf16> to vector<14x16xbf16>
    %cst_13 = arith.constant 0.000000e+00 : bf16
    %22 = vector.broadcast %cst_13 : bf16 to vector<2x16xbf16>
    %23 = tpu.concatenate %21, %22 in 0 : vector<14x16xbf16>, vector<2x16xbf16> -> vector<16x16xbf16>
    %c2 = arith.constant 2 : index
    %c0_14 = arith.constant 0 : index
    %c0_15 = arith.constant 0 : index
    %24 = vector.load %arg2[%c2, %c0_14, %c0_15] : memref<3x16x128xbf16, #tpu.memory_space<vmem>>, vector<1x16x128xbf16>
    %25 = vector.shape_cast %24 : vector<1x16x128xbf16> to vector<16x128xbf16>
    %cst_16 = arith.constant dense<0.000000e+00> : vector<16x128xf32>
    %26 = tpu.matmul %23, %25, %cst_16 {dimension_numbers = #tpu.dot_dimension_numbers<[1], [0], [0], [1], [0, 0, 1, 1], [], []>} : vector<16x16xbf16>, vector<16x128xbf16>, vector<16x128xf32> -> vector<16x128xf32>
    %27 = arith.addf %20, %26 : vector<16x128xf32>
    %c0_17 = arith.constant 0 : index
    %c0_18 = arith.constant 0 : index
    %28 = vector.load %arg3[%c0_17, %c0_18] : memref<1x128xf32, #tpu.memory_space<vmem>>, vector<1x128xf32>
    %29 = vector.broadcast %28 : vector<1x128xf32> to vector<16x128xf32>
    %30 = arith.addf %27, %29 : vector<16x128xf32>
    %cst_19 = arith.constant 0.000000e+00 : f32
    %31 = vector.broadcast %cst_19 : f32 to vector<16x128xf32>
    %32 = arith.maximumf %30, %31 : vector<16x128xf32>
    %33 = vector.shape_cast %32 : vector<16x128xf32> to vector<2x8x128xf32>
    %c0_20 = arith.constant 0 : index
    %c0_21 = arith.constant 0 : index
    %34 = vector.load %arg4[%c0_20, %c0_21] : memref<8x128xf32, #tpu.memory_space<vmem>>, vector<8x128xf32>
    %35 = vector.shape_cast %34 : vector<8x128xf32> to vector<1x8x128xf32>
    %36 = vector.broadcast %35 : vector<1x8x128xf32> to vector<2x8x128xf32>
    %37 = arith.mulf %33, %36 : vector<2x8x128xf32>
    %cst_22 = arith.constant dense<0xFF800000> : vector<2x128xf32>
    %38 = vector.multi_reduction <maximumf>, %37, %cst_22 [1] : vector<2x8x128xf32> to vector<2x128xf32>
    %39 = arith.truncf %38 : vector<2x128xf32> to vector<2x128xbf16>
    %c0_23 = arith.constant 0 : index
    %c0_24 = arith.constant 0 : index
    %40 = vector.load %arg5[%c0_23, %c0_24] : memref<128x128xbf16, #tpu.memory_space<vmem>>, vector<128x128xbf16>
    %cst_25 = arith.constant dense<0.000000e+00> : vector<2x128xf32>
    %41 = tpu.matmul %39, %40, %cst_25 {dimension_numbers = #tpu.dot_dimension_numbers<[1], [0], [0], [1], [0, 0, 1, 1], [], []>} : vector<2x128xbf16>, vector<128x128xbf16>, vector<2x128xf32> -> vector<2x128xf32>
    %c0_26 = arith.constant 0 : index
    %c0_27 = arith.constant 0 : index
    %42 = vector.load %arg6[%c0_26, %c0_27] : memref<1x128xf32, #tpu.memory_space<vmem>>, vector<1x128xf32>
    %43 = vector.broadcast %42 : vector<1x128xf32> to vector<2x128xf32>
    %44 = arith.addf %41, %43 : vector<2x128xf32>
    %cst_28 = arith.constant 0.000000e+00 : f32
    %45 = vector.broadcast %cst_28 : f32 to vector<2x128xf32>
    %46 = arith.subf %45, %44 : vector<2x128xf32>
    %47 = math.exp %46 : vector<2x128xf32>
    %cst_29 = arith.constant 1.000000e+00 : f32
    %48 = vector.broadcast %cst_29 : f32 to vector<2x128xf32>
    %49 = arith.addf %48, %47 : vector<2x128xf32>
    %50 = tpu.reciprocal %49 {approx = true} : vector<2x128xf32> -> vector<2x128xf32>
    %cst_30 = arith.constant 0.000000e+00 : f32
    %51 = vector.broadcast %cst_30 : f32 to vector<2x128xf32>
    %52 = arith.maximumf %44, %51 : vector<2x128xf32>
    %53 = arith.mulf %50, %52 : vector<2x128xf32>
    %cst_31 = arith.constant 1.000000e+00 : f32
    %54 = vector.broadcast %cst_31 : f32 to vector<2x128xf32>
    %55 = arith.subf %54, %50 : vector<2x128xf32>
    %56 = arith.mulf %55, %38 : vector<2x128xf32>
    %57 = arith.addf %53, %56 : vector<2x128xf32>
    %58 = arith.truncf %57 : vector<2x128xf32> to vector<2x128xbf16>
    %c0_32 = arith.constant 0 : index
    %c0_33 = arith.constant 0 : index
    %59 = vector.load %arg7[%c0_32, %c0_33] : memref<128x2xbf16, #tpu.memory_space<vmem>>, vector<128x2xbf16>
    %cst_34 = arith.constant dense<0.000000e+00> : vector<2x2xf32>
    %60 = tpu.matmul %58, %59, %cst_34 {dimension_numbers = #tpu.dot_dimension_numbers<[1], [0], [0], [1], [0, 0, 1, 1], [], []>} : vector<2x128xbf16>, vector<128x2xbf16>, vector<2x2xf32> -> vector<2x2xf32>
    %c0_35 = arith.constant 0 : index
    %c0_36 = arith.constant 0 : index
    %61 = vector.load %arg8[%c0_35, %c0_36] : memref<1x2xf32, #tpu.memory_space<vmem>>, vector<1x2xf32>
    %62 = vector.broadcast %61 : vector<1x2xf32> to vector<2x2xf32>
    %63 = arith.addf %60, %62 : vector<2x2xf32>
    %cst_37 = arith.constant dense<0xFF800000> : vector<2xf32>
    %64 = vector.multi_reduction <maximumf>, %63, %cst_37 [1] : vector<2x2xf32> to vector<2xf32>
    %65 = vector.shape_cast %64 : vector<2xf32> to vector<2x1xf32>
    %66 = vector.broadcast %65 : vector<2x1xf32> to vector<2x2xf32>
    %67 = arith.subf %63, %66 : vector<2x2xf32>
    %68 = math.exp %67 : vector<2x2xf32>
    %cst_38 = arith.constant dense<0.000000e+00> : vector<2xf32>
    %69 = vector.multi_reduction <add>, %68, %cst_38 [1] : vector<2x2xf32> to vector<2xf32>
    %70 = vector.shape_cast %69 : vector<2xf32> to vector<2x1xf32>
    %71 = math.log %70 : vector<2x1xf32>
    %72 = vector.broadcast %71 : vector<2x1xf32> to vector<2x2xf32>
    %73 = arith.subf %67, %72 : vector<2x2xf32>
    %c0_39 = arith.constant 0 : index
    %c0_40 = arith.constant 0 : index
    %74 = vector.load %arg9[%c0_39, %c0_40] : memref<2x2xf32, #tpu.memory_space<vmem>>, vector<2x2xf32>
    tpu.vector_store %arg9[%c0_39, %c0_40], %73 {strides = array<i32>} : memref<2x2xf32, #tpu.memory_space<vmem>>, vector<2x2xf32>,
    return
  }
}

</mosaic_0001>

<llo_original>
// kernel: tpu_custom_call.1
$region0: #{tpu_custom_call.1}
  #allocation0 [shape = 'u32[]', space=smem, size = 0x4, offset = 0x4, fixed_abs, tag = 'smem constant byte address 0x4 - core index']
  #allocation1 [shape = 'u32[72,128]{1,0:T(1,128)}', space=vmem, size = 0x9000, scoped, tag = 'internal scratch']
  %s0 = inlined_call_operand.vmem [shape: s32[16,1], index: 0, kind: input, shape index: {}]
  %s1 = inlined_call_operand.vmem [shape: bf16[32,16], index: 1, kind: input, shape index: {}]
  %s2 = inlined_call_operand.vmem [shape: bf16[3,16,128], index: 2, kind: input, shape index: {}]
  %s3 = inlined_call_operand.vmem [shape: f32[1,128], index: 3, kind: input, shape index: {}]
  %s4 = inlined_call_operand.vmem [shape: f32[8,128], index: 4, kind: input, shape index: {}]
  %s5 = inlined_call_operand.vmem [shape: bf16[128,128], index: 5, kind: input, shape index: {}]
  %s6 = inlined_call_operand.vmem [shape: f32[1,128], index: 6, kind: input, shape index: {}]
  %s7 = inlined_call_operand.vmem [shape: bf16[128,2], index: 7, kind: input, shape index: {}]
  %s8 = inlined_call_operand.vmem [shape: f32[1,2], index: 8, kind: input, shape index: {}]
  %s9 = inlined_call_operand.hbm [shape: f32[2,2], index: 9, kind: output, shape index: {}]
  %s10 = sld [smem:[#allocation0]]
  $region46: #{tpu_custom_call.1} parent=0
    _
  %s12 = ssub.s32 1, %s10
  %s13 = scalar_select 0, %s12, %s10
  $region1: #{tpu_custom_call.1} parent=0
    #allocation2 [shape = 'u8[1024]{0}', space=vmem, size = 0x400, scoped, tag = 'output window, operand 0, single buffered']
    #allocation3 [shape = 's32[1]{0}', space=sflag, size = 0x4, scoped, tag = 'scoped memory for tpu_custom_call.1']
    %14 = vsyncpa [#allocation3], 0
    // Predicated region
    $region2: #{tpu_custom_call.1} parent=1 // pred_check
      _
    $region3: #{tpu_custom_call.1} parent=1 // pred_check_branch
      %16 = sbr.rel (0) target = $region5
    $region4: #{tpu_custom_call.1} parent=1 // pred_region
      _
    $region5: #{tpu_custom_call.1} parent=1 // pred_fallthru
      _
    // Predicated region
    $region6: #{tpu_custom_call.1} parent=1 // pred_check
      _
    $region7: #{tpu_custom_call.1} parent=1 // pred_check_branch
      %18 = sbr.rel (0) target = $region9
    $region8: #{tpu_custom_call.1} parent=1 // pred_region
      _
    $region9: #{tpu_custom_call.1} parent=1 // pred_fallthru
      _
    // Predicated region
    $region10: #{tpu_custom_call.1} parent=1 // pred_check
      _
    $region11: #{tpu_custom_call.1} parent=1 // pred_check_branch
      %20 = sbr.rel (0) target = $region13
    $region12: #{tpu_custom_call.1} parent=1 // pred_region
      _
    $region13: #{tpu_custom_call.1} parent=1 // pred_fallthru
      _
    // Predicated region
    $region14: #{tpu_custom_call.1} parent=1 // pred_check
      _
    $region15: #{tpu_custom_call.1} parent=1 // pred_check_branch
      %22 = sbr.rel (0) target = $region17
    $region16: #{tpu_custom_call.1} parent=1 // pred_region
      _
    $region17: #{tpu_custom_call.1} parent=1 // pred_fallthru
      _
    // Predicated region
    $region18: #{tpu_custom_call.1} parent=1 // pred_check
      _
    $region19: #{tpu_custom_call.1} parent=1 // pred_check_branch
      %24 = sbr.rel (0) target = $region21
    $region20: #{tpu_custom_call.1} parent=1 // pred_region
      _
    $region21: #{tpu_custom_call.1} parent=1 // pred_fallthru
      _
    // Predicated region
    $region22: #{tpu_custom_call.1} parent=1 // pred_check
      _
    $region23: #{tpu_custom_call.1} parent=1 // pred_check_branch
      %26 = sbr.rel (0) target = $region25
    $region24: #{tpu_custom_call.1} parent=1 // pred_region
      _
    $region25: #{tpu_custom_call.1} parent=1 // pred_fallthru
      _
    // Predicated region
    $region26: #{tpu_custom_call.1} parent=1 // pred_check
      _
    $region27: #{tpu_custom_call.1} parent=1 // pred_check_branch
      %28 = sbr.rel (0) target = $region29
    $region28: #{tpu_custom_call.1} parent=1 // pred_region
      _
    $region29: #{tpu_custom_call.1} parent=1 // pred_fallthru
      _
    // Predicated region
    $region30: #{tpu_custom_call.1} parent=1 // pred_check
      _
    $region31: #{tpu_custom_call.1} parent=1 // pred_check_branch
      %30 = sbr.rel (0) target = $region33
    $region32: #{tpu_custom_call.1} parent=1 // pred_region
      _
    $region33: #{tpu_custom_call.1} parent=1 // pred_fallthru
      _
    // Predicated region
    $region34: #{tpu_custom_call.1} parent=1 // pred_check
      _
    $region35: #{tpu_custom_call.1} parent=1 // pred_check_branch
      %32 = sbr.rel (0) target = $region37
    $region36: #{tpu_custom_call.1} parent=1 // pred_region
      _
    $region37: #{tpu_custom_call.1} parent=1 // pred_fallthru
      _
    %v34 = vld [vmem:[%s0] sm:$0xff]
    %v35 = vld [vmem:[%s0 + $0x8] sm:$0xff]
    %v36 = vlaneseq
    %v37 = vand.u32 %v36, 127
    %38 = vset.pattern.permute.xlu0 0
    %39 = vperm.xlu0 %38, %v34
    %v40 = vpop.permute.xlu0 %39
    %41 = vset.pattern.permute.xlu0 0
    %42 = vperm.xlu0 %41, %v35
    %v43 = vpop.permute.xlu0 %42
    %vm44 = vcmp.eq.s32.totalorder %v40, %v37
    %vm45 = vcmp.eq.s32.totalorder %v43, %v37
    %v46 = vsel %vm44, 1.0, 0.0
    %v47 = vsel %vm45, 1.0, 0.0
    %v48 = vpack.c.bf16 %v47, %v46
    %v49 = vld [vmem:[%s1] sm:$0xf]
    %v50 = vld [vmem:[%s1 + $0x4] sm:$0xf]
    %v51 = vld [vmem:[%s1 + $0x8] sm:$0xf]
    %v52 = vld [vmem:[%s1 + $0xc] sm:$0xf]
    %v57 = vunpack.c.l.b16 %v49
    %v58 = vunpack.c.l.b16 %v50
    %v59 = vunpack.c.l.b16 %v51
    %v60 = vunpack.c.l.b16 %v52
    %v61 = vpack.c.b16 %v58, %v57
    %v62 = vpack.c.b16 %v60, %v59
    %vm65 = vcmask 261120
    %v67 = vsel %vm65, %v48, 0
    %69 = vmatpush.bf16.msra.mxu0 0
    %70 = vmatpush.bf16.msra.mxu0 0
    %71 = vmatpush.bf16.msra.mxu0 0
    %72 = vmatpush.bf16.msra.mxu0 0
    %73 = vmatpush.bf16.msra.mxu0 0
    %74 = vmatpush.bf16.msra.mxu0 0
    %75 = vmatpush.bf16.msra.mxu0 %v62
    %76 = vmatpush.bf16.msra.mxu0 %v61
    %77 = vmatmul.bf16.gmra.mxu0 %v67
    %v78 = vpop.f32.mrf.mxu0
    %v79 = vadd.f32 0.0, %v78
    %v80 = vpop.f32.mrf.mxu0
    %v81 = vadd.f32 0.0, %v80
    %82 = vdwg.mxu0
    %v83 = vpack.c.bf16 %v79, %v79
    %v84 = vpack.c.bf16 %v81, %v81
    %v85 = vld [vmem:[%s2] sm:$0xf]
    %v86 = vld [vmem:[%s2 + $0x4] sm:$0xf]
    %v89 = vunpack.c.l.b16 %v83
    %v90 = vunpack.c.l.b16 %v84
    %v91 = vpack.c.b16 %v90, %v89
    %v93 = vshrl.u32 %v91, 16
    %v95 = vshll.u32 %v91, 16
    %v97 = vrot.slane %v95, 1
    %v98 = vor.u32 %v93, %v97
    %vm100 = vcmask 1047552
    %vm101 = vsmask.f32 7424
    %vm102 = vmand %vm100, %vm101
    %v103 = vsel %vm102, %v98, 0
    %s104 = scalar_lea.vmem %s2, 8
    %v105 = vld [vmem:[%s104] sm:$0xf]
    %v106 = vld [vmem:[%s104 + $0x4] sm:$0xf]
    %v109 = vunpack.c.l.b16 %v105
    %v110 = vunpack.c.l.b16 %v106
    %v111 = vpack.c.b16 %v110, %v109
    %vm113 = vcmask 130048
    %v115 = vsel %vm113, %v103, 0
    %117 = vmatpush.bf16.msra.mxu0 0
    %118 = vmatpush.bf16.msra.mxu0 0
    %119 = vmatpush.bf16.msra.mxu0 0
    %120 = vmatpush.bf16.msra.mxu0 0
    %121 = vmatpush.bf16.msra.mxu0 0
    %122 = vmatpush.bf16.msra.mxu0 0
    %123 = vmatpush.bf16.msra.mxu0 0
    %124 = vmatpush.bf16.msra.mxu0 %v111
    %125 = vmatmul.bf16.gmra.mxu0 %v115
    %v126 = vpop.f32.mrf.mxu0
    %v127 = vadd.f32 0.0, %v126
    %v128 = vpop.f32.mrf.mxu0
    %v129 = vadd.f32 0.0, %v128
    %130 = vdwg.mxu0
    %v133 = vunpack.c.l.b16 %v85
    %v134 = vunpack.c.l.b16 %v86
    %v135 = vpack.c.b16 %v134, %v133
    %v137 = vsel %vm113, %v91, 0
    %139 = vmatpush.bf16.msra.mxu0 0
    %140 = vmatpush.bf16.msra.mxu0 0
    %141 = vmatpush.bf16.msra.mxu0 0
    %142 = vmatpush.bf16.msra.mxu0 0
    %143 = vmatpush.bf16.msra.mxu0 0
    %144 = vmatpush.bf16.msra.mxu0 0
    %145 = vmatpush.bf16.msra.mxu0 0
    %146 = vmatpush.bf16.msra.mxu0 %v135
    %147 = vmatmul.bf16.gmra.mxu0 %v137
    %v148 = vpop.f32.mrf.mxu0
    %v149 = vadd.f32 %v127, %v148
    %v150 = vpop.f32.mrf.mxu0
    %v151 = vadd.f32 %v129, %v150
    %152 = vdwg.mxu0
    %v153 = vrot.slane %v91, 1
    %vm154 = vcmask 1046528
    %v157 = vsel %vm154, %v153, 0
    %s158 = scalar_lea.vmem %s2, 16
    %v159 = vld [vmem:[%s158] sm:$0xf]
    %v160 = vld [vmem:[%s158 + $0x4] sm:$0xf]
    %v163 = vunpack.c.l.b16 %v159
    %v164 = vunpack.c.l.b16 %v160
    %v165 = vpack.c.b16 %v164, %v163
    %v167 = vsel %vm113, %v157, 0
    %169 = vmatpush.bf16.msra.mxu0 0
    %170 = vmatpush.bf16.msra.mxu0 0
    %171 = vmatpush.bf16.msra.mxu0 0
    %172 = vmatpush.bf16.msra.mxu0 0
    %173 = vmatpush.bf16.msra.mxu0 0
    %174 = vmatpush.bf16.msra.mxu0 0
    %175 = vmatpush.bf16.msra.mxu0 0
    %176 = vmatpush.bf16.msra.mxu0 %v165
    %177 = vmatmul.bf16.gmra.mxu0 %v167
    %v178 = vpop.f32.mrf.mxu0
    %v179 = vadd.f32 0.0, %v178
    %v180 = vpop.f32.mrf.mxu0
    %v181 = vadd.f32 0.0, %v180
    %182 = vdwg.mxu0
    %v183 = vadd.f32 %v149, %v179
    %v184 = vadd.f32 %v151, %v181
    %v185 = vld [vmem:[%s3] sm:$0x1]
    %v187 = vperm.slane %v185, 0
    %v189 = vadd.f32 %v183, %v187
    %v190 = vadd.f32 %v184, %v187
    %v191 = vmax.f32 %v189, 0.0
    %v192 = vmax.f32 %v190, 0.0
    %v193 = vld [vmem:[%s4] sm:$0xff]
    %v194 = vmul.f32 %v191, %v193
    %v195 = vmul.f32 %v192, %v193
    %v196 = vrot.slane %v194, 4
    %v197 = vmax.f32 %v194, %v196
    %v198 = vrot.slane %v197, 2
    %v199 = vmax.f32 %v197, %v198
    %v200 = vrot.slane %v199, 1
    %v201 = vmax.f32 %v199, %v200
    %v202 = vrot.slane %v195, 4
    %v203 = vmax.f32 %v195, %v202
    %v204 = vrot.slane %v203, 2
    %v205 = vmax.f32 %v203, %v204
    %v206 = vrot.slane %v205, 1
    %v207 = vmax.f32 %v205, %v206
    %v208 = vpack.c.bf16 %v201, %v201
    %v209 = vpack.c.bf16 %v207, %v207
    %v210 = vld [vmem:[%s5] sm:$0xf]
    %v211 = vld [vmem:[%s5 + $0x4] sm:$0xf]
    %v212 = vld [vmem:[%s5 + $0x8] sm:$0xf]
    %v213 = vld [vmem:[%s5 + $0xc] sm:$0xf]
    %v214 = vld [vmem:[%s5 + $0x10] sm:$0xf]
    %v215 = vld [vmem:[%s5 + $0x14] sm:$0xf]
    %v216 = vld [vmem:[%s5 + $0x18] sm:$0xf]
    %v217 = vld [vmem:[%s5 + $0x1c] sm:$0xf]
    %v218 = vld [vmem:[%s5 + $0x20] sm:$0xf]
    %v219 = vld [vmem:[%s5 + $0x24] sm:$0xf]
    %v220 = vld [vmem:[%s5 + $0x28] sm:$0xf]
    %v221 = vld [vmem:[%s5 + $0x2c] sm:$0xf]
    %v222 = vld [vmem:[%s5 + $0x30] sm:$0xf]
    %v223 = vld [vmem:[%s5 + $0x34] sm:$0xf]
    %v224 = vld [vmem:[%s5 + $0x38] sm:$0xf]
    %v225 = vld [vmem:[%s5 + $0x3c] sm:$0xf]
    %v226 = vld [vmem:[%s6] sm:$0x1]
    %v228 = vperm.slane %v226, 0
    %v232 = vunpack.c.l.b16 %v208
    %v233 = vunpack.c.l.b16 %v209
    %vm234 = vcmask 1041409
    %v235 = vsel %vm234, %v233, %v232
    %v236 = vpack.c.b16 %v235, %v235
    %v254 = vunpack.c.l.b16 %v210
    %v255 = vunpack.c.l.b16 %v211
    %v256 = vunpack.c.l.b16 %v212
    %v257 = vunpack.c.l.b16 %v213
    %v258 = vunpack.c.l.b16 %v214
    %v259 = vunpack.c.l.b16 %v215
    %v260 = vunpack.c.l.b16 %v216
    %v261 = vunpack.c.l.b16 %v217
    %v262 = vunpack.c.l.b16 %v218
    %v263 = vunpack.c.l.b16 %v219
    %v264 = vunpack.c.l.b16 %v220
    %v265 = vunpack.c.l.b16 %v221
    %v266 = vunpack.c.l.b16 %v222
    %v267 = vunpack.c.l.b16 %v223
    %v268 = vunpack.c.l.b16 %v224
    %v269 = vunpack.c.l.b16 %v225
    %v270 = vpack.c.b16 %v255, %v254
    %v271 = vpack.c.b16 %v257, %v256
    %v272 = vpack.c.b16 %v259, %v258
    %v273 = vpack.c.b16 %v261, %v260
    %v274 = vpack.c.b16 %v263, %v262
    %v275 = vpack.c.b16 %v265, %v264
    %v276 = vpack.c.b16 %v267, %v266
    %v277 = vpack.c.b16 %v269, %v268
    %286 = vmatpush.bf16.msra.mxu0 %v277
    %287 = vmatpush.bf16.msra.mxu0 %v276
    %288 = vmatpush.bf16.msra.mxu0 %v275
    %289 = vmatpush.bf16.msra.mxu0 %v274
    %290 = vmatpush.bf16.msra.mxu0 %v273
    %291 = vmatpush.bf16.msra.mxu0 %v272
    %292 = vmatpush.bf16.msra.mxu0 %v271
    %293 = vmatpush.bf16.msra.mxu0 %v270
    %294 = vmatmul.bf16.gmra.mxu0 %v236
    %v295 = vpop.f32.mrf.mxu0
    %v296 = vadd.f32 %v228, %v295
    %v297 = vpop.f32.mrf.mxu0
    %298 = vdwg.mxu0
    %v299 = vsub.f32 0.0, %v296
    %v300 = vmul.f32 %v299, 1.442695
    %v301 = vpow.pop %v300
    %v302 = vadd.f32 %v301, 1.0
    %v303 = vrcp.pop %v302
    %v304 = vmax.f32 %v296, 0.0
    %v305 = vmul.f32 %v303, %v304
    %v306 = vsub.f32 1.0, %v303
    %v309 = vsel %vm234, %v207, %v201
    %v311 = vmul.f32 %v306, %v309
    %v312 = vadd.f32 %v305, %v311
    %v313 = vpack.c.bf16 %v312, %v312
    %v314 = vld [vmem:[%s7] sm:$0xf]
    %v315 = vld [vmem:[%s7 + $0x4] sm:$0xf]
    %v316 = vld [vmem:[%s7 + $0x8] sm:$0xf]
    %v317 = vld [vmem:[%s7 + $0xc] sm:$0xf]
    %v318 = vld [vmem:[%s7 + $0x10] sm:$0xf]
    %v319 = vld [vmem:[%s7 + $0x14] sm:$0xf]
    %v320 = vld [vmem:[%s7 + $0x18] sm:$0xf]
    %v321 = vld [vmem:[%s7 + $0x1c] sm:$0xf]
    %v322 = vld [vmem:[%s7 + $0x20] sm:$0xf]
    %v323 = vld [vmem:[%s7 + $0x24] sm:$0xf]
    %v324 = vld [vmem:[%s7 + $0x28] sm:$0xf]
    %v325 = vld [vmem:[%s7 + $0x2c] sm:$0xf]
    %v326 = vld [vmem:[%s7 + $0x30] sm:$0xf]
    %v327 = vld [vmem:[%s7 + $0x34] sm:$0xf]
    %v328 = vld [vmem:[%s7 + $0x38] sm:$0xf]
    %v329 = vld [vmem:[%s7 + $0x3c] sm:$0xf]
    %v330 = vld [vmem:[%s8] sm:$0x1]
    %v332 = vperm.slane %v330, 0
    %v350 = vunpack.c.l.b16 %v314
    %v351 = vunpack.c.l.b16 %v315
    %v352 = vunpack.c.l.b16 %v316
    %v353 = vunpack.c.l.b16 %v317
    %v354 = vunpack.c.l.b16 %v318
    %v355 = vunpack.c.l.b16 %v319
    %v356 = vunpack.c.l.b16 %v320
    %v357 = vunpack.c.l.b16 %v321
    %v358 = vunpack.c.l.b16 %v322
    %v359 = vunpack.c.l.b16 %v323
    %v360 = vunpack.c.l.b16 %v324
    %v361 = vunpack.c.l.b16 %v325
    %v362 = vunpack.c.l.b16 %v326
    %v363 = vunpack.c.l.b16 %v327
    %v364 = vunpack.c.l.b16 %v328
    %v365 = vunpack.c.l.b16 %v329
    %v366 = vpack.c.b16 %v351, %v350
    %v367 = vpack.c.b16 %v353, %v352
    %v368 = vpack.c.b16 %v355, %v354
    %v369 = vpack.c.b16 %v357, %v356
    %v370 = vpack.c.b16 %v359, %v358
    %v371 = vpack.c.b16 %v361, %v360
    %v372 = vpack.c.b16 %v363, %v362
    %v373 = vpack.c.b16 %v365, %v364
    %382 = vmatpush.bf16.msra.mxu0 %v373
    %383 = vmatpush.bf16.msra.mxu0 %v372
    %384 = vmatpush.bf16.msra.mxu0 %v371
    %385 = vmatpush.bf16.msra.mxu0 %v370
    %386 = vmatpush.bf16.msra.mxu0 %v369
    %387 = vmatpush.bf16.msra.mxu0 %v368
    %388 = vmatpush.bf16.msra.mxu0 %v367
    %389 = vmatpush.bf16.msra.mxu0 %v366
    %390 = vmatmul.bf16.gmra.mxu0 %v313
    %v391 = vpop.f32.mrf.mxu0
    %v392 = vadd.f32 %v332, %v391
    %v393 = vpop.f32.mrf.mxu0
    %394 = vdwg.mxu0
    %vm395 = vcmask 9216
    %v396 = vsel %vm395, %v392, -inf
    %397 = vmax.xlane.f32.xlu0 %v396
    %v398 = vpop.xlane.xlu0 %397
    %v399 = vsub.f32 %v392, %v398
    %v400 = vmul.f32 %v399, 1.442695
    %v401 = vpow.pop %v400
    %v402 = vsel %vm395, %v401, 0.0
    %403 = vadd.xlane.f32.xlu0 %v402
    %v404 = vpop.xlane.xlu0 %403
    %v405 = vlog2.pop %v404
    %v406 = vmul.f32 %v405, 0.6931472
    %v407 = vsub.f32 %v399, %v406
    %408 = vst.msk [vmem:[#allocation2] sm:$0x3] %vm395, %v407
    // Predicated region
    $region38: #{tpu_custom_call.1} parent=1 // pred_check
      _
    $region39: #{tpu_custom_call.1} parent=1 // pred_check_branch
      %410 = sbr.rel (0) target = $region41
    $region40: #{tpu_custom_call.1} parent=1 // pred_region
      %412 = vsyncadd [#allocation3], 0
      %s414 = sshll.u32 [#allocation2], 4
      %s415 = int_to_ptr.vmem [resolvable:$true] %s414
      %s416 = sshll.u32 %s9, 4
      %s417 = int_to_ptr.hbm [resolvable:$true] %s416
      %419 = dma.vmem_to_hbm [thread:$0]  %s415, 32, %s417, [#allocation3]
    $region41: #{tpu_custom_call.1} parent=1 // pred_fallthru
      _
    // Predicated region
    $region42: #{tpu_custom_call.1} parent=1 // pred_check
      _
    $region43: #{tpu_custom_call.1} parent=1 // pred_check_branch
      %421 = sbr.rel (0) target = $region45
    $region44: #{tpu_custom_call.1} parent=1 // pred_region
      %423 = dma.done [#allocation3], 32
    $region45: #{tpu_custom_call.1} parent=1 // pred_fallthru
      _
    %424 = vsyncpa [#allocation3], 1

</llo_original>
